<compile_context>
chip_gen: v7x
topology: tpu7x:2x2x1
jax: 0.10.0
libtpu: 0.0.40
codegen_flags: <defaults>
</compile_context>

<pallas_src>
from functools import partial
import math

import jax
import jax.numpy as jnp
from jax import lax
from jax.experimental import pallas as pl
from jax.experimental.pallas import tpu as pltpu


# --------------------------------------------------------------------------
# kernel
# --------------------------------------------------------------------------
def _make_kernel(Cin, Cout, width, W, T):
    f32, bf16 = jnp.float32, jnp.bfloat16
    taps = [(dy, dx) for dy in (-1, 0, 1) for dx in (-1, 0, 1)]

    def kernel(x_ref, halo_ref, m_ref, w1_ref, b1_ref, w2_ref, b2_ref,
               w3_ref, b3_ref, o_ref, s_ref):
        x_main = x_ref[0].astype(f32)                       # (Cin, T)
        halo = halo_ref[0, 0].astype(f32)                   # (Cin, 2W)
        zpad = jnp.zeros((Cin, 1), f32)
        # extended slab: [1 pad | row above (W) | TH main rows (T) | row below (W) | 1 pad]
        x_ext = jnp.concatenate(
            [zpad, halo[:, :W], x_main, halo[:, W:], zpad], axis=1)  # (Cin, T+2W+2)

        # conv1 (1x1) + folded BN1 + ReLU over main rows AND the halo rows.
        h_ext = jnp.dot(w1_ref[...], x_ext.astype(bf16),
                        preferred_element_type=f32) + b1_ref[...]
        h_ext = jnp.maximum(h_ext, 0.0)                     # (width, T+2W+2) f32

        # conv2 (3x3, pad=1): write the 9 shifted+masked taps into the stacked
        # scratch, then contract once with K = 9*width (single big MXU dot).
        for k, (dy, dx) in enumerate(taps):
            s0 = 1 + (1 + dy) * W + dx                      # static lane offset
            tap = h_ext[:, s0:s0 + T]                       # (width, T)
            if k != 4:                                      # center tap needs no mask
                tap = tap * m_ref[k:k + 1, :]
            s_ref[k * width:(k + 1) * width, :] = tap
        h2 = jnp.dot(w2_ref[...], s_ref[...].astype(bf16),
                     preferred_element_type=f32) + b2_ref[...]
        h2 = jnp.maximum(h2, 0.0)                           # (width, T) f32

        # conv3 (1x1) + folded BN3, residual add in f32; NO final ReLU.
        out = jnp.dot(w3_ref[...], h2.astype(bf16),
                      preferred_element_type=f32) + b3_ref[...]
        o_ref[0] = (out + x_main).astype(o_ref.dtype)

    return kernel


def _pick_rows_per_tile(H, W, rows_per_tile, target_lanes):
    # Smallest row count whose lane tile TH*W is a multiple of 128 (keeps every
    # block lane-aligned -> unmasked vst); whole image if that exceeds H.
    # TODO(synk): for widths like W=138 (gcd(W,128)=2 forces TH=64), pad W to
    # the next multiple of 16 in the wrapper instead, to unlock small row tiles.
    base = 128 // math.gcd(W, 128)
    if rows_per_tile is None:
        th = base * max(1, round(target_lanes / (base * W)))
    else:
        th = base * max(1, -(-rows_per_tile // base))
    return H if th >= H else th


# --------------------------------------------------------------------------
# wrapper
# --------------------------------------------------------------------------
def no_relu_bottleneck(x, params, *, eps=1e-5, rows_per_tile=None,
                       target_lanes=1024):
    """Pallas forward of NoReLUBottleneck for the default configuration
    (stride=1, groups=1, dilation=1, downsample=None).  x: (N, Cin, H, W)."""
    N, Cin, H, W = x.shape
    f32, bf16 = jnp.float32, jnp.bfloat16

    # ---- weights: fold eval-mode BN scale, stack conv2 taps, cast to bf16 ---
    w1 = params["w1"][:, :, 0, 0].astype(f32)               # (width, Cin)
    width = w1.shape[0]
    w2 = params["w2"].astype(f32)                            # (width, width, 3, 3)
    w3 = params["w3"][:, :, 0, 0].astype(f32)                # (Cout, width)
    Cout = w3.shape[0]
    if Cout != Cin:
        raise NotImplementedError("downsample path not implemented")
    # TODO(synk): stride>1, groups>1, dilation>1, a downsample branch and
    # training-mode BN (batch statistics) are not implemented; the module's
    # default constructor is covered.

    def fold(p):
        s = p["gamma"].astype(f32) / jnp.sqrt(p["var"].astype(f32) + eps)
        return s, p["beta"].astype(f32) - p["mean"].astype(f32) * s

    s1, c1 = fold(params["bn1"])
    s2, c2 = fold(params["bn2"])
    s3, c3 = fold(params["bn3"])

    w1f = (w1 * s1[:, None]).astype(bf16)                            # (width, Cin)
    w2k = jnp.transpose(w2, (2, 3, 0, 1)).reshape(9, width, width)   # (k, O, I)
    w2s = jnp.transpose(w2k, (1, 0, 2)).reshape(width, 9 * width)    # (O, 9*I)
    w2s = (w2s * s2[:, None]).astype(bf16)
    w3f = (w3 * s3[:, None]).astype(bf16)                            # (Cout, width)
    b1, b2, b3 = c1[:, None], c2[:, None], c3[:, None]               # (C, 1) f32

    # ---- spatial tiling: TH rows per tile, lane tile T = TH*W ---------------
    TH = _pick_rows_per_tile(H, W, rows_per_tile, target_lanes)
    Nt = -(-H // TH)
    Hp = Nt * TH
    T = TH * W

    xp = x if Hp == H else jnp.pad(x, ((0, 0), (0, 0), (0, Hp - H), (0, 0)))
    x_flat = xp.reshape(N, Cin, Hp * W)

    # 1-row halos per tile (rows t*TH-1 and t*TH+TH, zero outside the image),
    # shipped as a small side array so all BlockSpecs stay plain Blocked.
    xh = jnp.pad(xp, ((0, 0), (0, 0), (1, 1), (0, 0)))               # rows -1..Hp
    top = xh[:, :, 0:Hp:TH, :]                                       # (N,Cin,Nt,W)
    bot = xh[:, :, TH + 1:Hp + 2:TH, :]                              # (N,Cin,Nt,W)
    halos = jnp.stack([top, bot], axis=-2)                           # (N,Cin,Nt,2,W)
    halos = jnp.transpose(halos, (0, 2, 1, 3, 4)).reshape(N, Nt, Cin, 2 * W)

    # Per-tap boundary masks (geometry only, bounds use the REAL H/W so the
    # conv3x3 zero-padding and flattened-row wrap are both handled; padded
    # output rows are sliced off after the call).
    row = jnp.repeat(jnp.arange(Hp), W)
    col = jnp.tile(jnp.arange(W), Hp)
    masks = jnp.stack([((col + dx >= 0) & (col + dx < W) &
                        (row + dy >= 0) & (row + dy < H))
                       for dy in (-1, 0, 1) for dx in (-1, 0, 1)]).astype(f32)

    kernel = _make_kernel(Cin, Cout, width, W, T)

    def full(a):
        nd = a.ndim
        return pl.BlockSpec(a.shape, lambda n, t: (0,) * nd)

    out = pl.pallas_call(
        kernel,
        out_shape=jax.ShapeDtypeStruct((N, Cout, Hp * W), x.dtype),
        grid=(N, Nt),
        in_specs=[
            pl.BlockSpec((1, Cin, T), lambda n, t: (n, 0, t)),          # x tile
            pl.BlockSpec((1, 1, Cin, 2 * W), lambda n, t: (n, t, 0, 0)),  # halo rows
            pl.BlockSpec((9, T), lambda n, t: (0, t)),                  # edge masks
            full(w1f), full(b1), full(w2s), full(b2), full(w3f), full(b3),
        ],
        out_specs=pl.BlockSpec((1, Cout, T), lambda n, t: (n, 0, t)),
        scratch_shapes=[pltpu.VMEM((9 * width, T), f32)],               # stacked taps
        compiler_params=pltpu.CompilerParams(
            dimension_semantics=("parallel", "parallel"),
            # Per-step live bytes stay in the single-digit-MiB range at real
            # YOLACT shapes; 32 MiB covers all generations (raises v5e's 16 MiB
            # scoped default, stays well under v7x's 64 MiB physical VMEM).
            vmem_limit_bytes=32 * 1024 * 1024),
        # TODO(synk): on v7x, verify the batch/tile axes shard across both
        # TensorCores; if not, switch the leading axis to pltpu.CORE_PARALLEL.
    )(x_flat, halos, masks, w1f, b1, w2s, b2, w3f, b3)

    out = out.reshape(N, Cout, Hp, W)
    return out[:, :, :H, :] if Hp != H else out


# ---------------------------- pure-JAX reference ----------------------------
def no_relu_bottleneck_ref(x, params, eps=1e-5):
    dn = ("NCHW", "OIHW", "NCHW")

    def bn(y, p):
        s = p["gamma"] / jnp.sqrt(p["var"] + eps)
        return (y * s[None, :, None, None]
                + (p["beta"] - p["mean"] * s)[None, :, None, None])

    h = lax.conv_general_dilated(x, params["w1"], (1, 1), ((0, 0), (0, 0)),
                                 dimension_numbers=dn)
    h = jnp.maximum(bn(h, params["bn1"]), 0.0)
    h = lax.conv_general_dilated(h, params["w2"], (1, 1), ((1, 1), (1, 1)),
                                 dimension_numbers=dn)
    h = jnp.maximum(bn(h, params["bn2"]), 0.0)
    h = lax.conv_general_dilated(h, params["w3"], (1, 1), ((0, 0), (0, 0)),
                                 dimension_numbers=dn)
    h = bn(h, params["bn3"])
    return h + x


# ------------------------------- synthetic init ------------------------------
def init_params(key, inplanes, planes, base_width=64, groups=1):
    width = int(planes * (base_width / 64.0)) * groups
    cout = planes * 4  # expansion
    ks = jax.random.split(key, 6)

    def conv_w(k, o, i, kh, kw):
        return jax.random.normal(k, (o, i, kh, kw), jnp.float32) * 0.1

    def bn(k, c):
        k1, k2, k3, k4 = jax.random.split(k, 4)
        return dict(gamma=1.0 + 0.1 * jax.random.normal(k1, (c,), jnp.float32),
                    beta=0.1 * jax.random.normal(k2, (c,), jnp.float32),
                    mean=0.1 * jax.random.normal(k3, (c,), jnp.float32),
                    var=jax.random.uniform(k4, (c,), jnp.float32, 0.5, 1.5))

    return {
        "w1": conv_w(ks[0], width, inplanes, 1, 1), "bn1": bn(ks[1], width),
        "w2": conv_w(ks[2], width, width, 3, 3),    "bn2": bn(ks[3], width),
        "w3": conv_w(ks[4], cout, width, 1, 1),     "bn3": bn(ks[5], cout),
    }


if __name__ == "__main__":
    key = jax.random.PRNGKey(0)
    k1, k2, k3, k4 = jax.random.split(key, 4)

    def run_case(kx, kp, N, inplanes, planes, H, W, rows_per_tile):
        x = jax.random.normal(kx, (N, inplanes, H, W), jnp.float32)
        params = init_params(kp, inplanes, planes)
        fn = jax.jit(partial(no_relu_bottleneck, params=params,
                             rows_per_tile=rows_per_tile))
        out = jax.block_until_ready(fn(x))
        ref = no_relu_bottleneck_ref(x, params)
        assert out.shape == ref.shape
        assert bool(jnp.isfinite(out).all())
        err = float(jnp.max(jnp.abs(out - ref)))
        # bf16 MXU path (f32 accumulation / bias / ReLU / residual): expect
        # ~1e-2 abs error on O(1) outputs; 5e-2 is a safe bound vs f32 ref.
        assert err < 5e-2, f"max abs err {err}"
        return err

    # case 1: inplanes=32, planes=8 -> width=8, Cout=32 (identity residual);
    # 16x16 image, 8 rows per tile -> grid (2 batch, 2 row tiles), T=128 lanes.
    run_case(k1, k2, N=2, inplanes=32, planes=8, H=16, W=16, rows_per_tile=8)
    # case 2: ragged H=20 (padded to 24 rows, 3 row tiles): exercises the halo
    # exchange across tile boundaries plus top/bottom-pad masking.
    run_case(k3, k4, N=1, inplanes=32, planes=8, H=20, W=16, rows_per_tile=8)

    print("KERNEL_OK")
</pallas_src>

<mosaic_0001>
module attributes {stable_mosaic.version = 11 : i64} {
  func.func @kernel(%arg0: i32, %arg1: i32, %arg2: memref<1x32x128xf32, #tpu.memory_space<vmem>>, %arg3: memref<1x1x32x32xf32, #tpu.memory_space<vmem>>, %arg4: memref<9x128xf32, #tpu.memory_space<vmem>>, %arg5: memref<8x32xbf16, #tpu.memory_space<vmem>>, %arg6: memref<8x1xf32, #tpu.memory_space<vmem>>, %arg7: memref<8x72xbf16, #tpu.memory_space<vmem>>, %arg8: memref<8x1xf32, #tpu.memory_space<vmem>>, %arg9: memref<32x8xbf16, #tpu.memory_space<vmem>>, %arg10: memref<32x1xf32, #tpu.memory_space<vmem>>, %arg11: memref<1x32x128xf32, #tpu.memory_space<vmem>>, %arg12: memref<72x128xf32, #tpu.memory_space<vmem>>) attributes {dimension_semantics = [#tpu.dimension_semantics<parallel>, #tpu.dimension_semantics<parallel>], iteration_bounds = array<i64: 2, 2>, scalar_prefetch = 0 : i64, scratch_operands = 1 : i64, tpu.core_type = #tpu.core_type<tc>, window_params = [{transform_indices = @transform_0, window_bounds = array<i64: 1, 32, 128>}, {transform_indices = @transform_1, window_bounds = array<i64: 1, 1, 32, 32>}, {transform_indices = @transform_2, window_bounds = array<i64: 9, 128>}, {pipeline_mode = #tpu.pipeline_mode<synchronous>, transform_indices = @transform_3, window_bounds = array<i64: 8, 32>}, {pipeline_mode = #tpu.pipeline_mode<synchronous>, transform_indices = @transform_4, window_bounds = array<i64: 8, 1>}, {pipeline_mode = #tpu.pipeline_mode<synchronous>, transform_indices = @transform_5, window_bounds = array<i64: 8, 72>}, {pipeline_mode = #tpu.pipeline_mode<synchronous>, transform_indices = @transform_6, window_bounds = array<i64: 8, 1>}, {pipeline_mode = #tpu.pipeline_mode<synchronous>, transform_indices = @transform_7, window_bounds = array<i64: 32, 8>}, {pipeline_mode = #tpu.pipeline_mode<synchronous>, transform_indices = @transform_8, window_bounds = array<i64: 32, 1>}, {transform_indices = @transform_9, window_bounds = array<i64: 1, 32, 128>}]} {
    %c0 = arith.constant 0 : index
    %c0_0 = arith.constant 0 : index
    %c0_1 = arith.constant 0 : index
    %0 = vector.load %arg2[%c0, %c0_0, %c0_1] : memref<1x32x128xf32, #tpu.memory_space<vmem>>, vector<1x32x128xf32>
    %1 = vector.shape_cast %0 : vector<1x32x128xf32> to vector<32x128xf32>
    %c0_2 = arith.constant 0 : index
    %c0_3 = arith.constant 0 : index
    %c0_4 = arith.constant 0 : index
    %c0_5 = arith.constant 0 : index
    %2 = vector.load %arg3[%c0_2, %c0_3, %c0_4, %c0_5] : memref<1x1x32x32xf32, #tpu.memory_space<vmem>>, vector<1x1x32x32xf32>
    %3 = vector.shape_cast %2 : vector<1x1x32x32xf32> to vector<32x32xf32>
    %cst = arith.constant 0.000000e+00 : f32
    %4 = vector.broadcast %cst : f32 to vector<32x1xf32>
    %5 = vector.extract_strided_slice %3 {offsets = [0, 0], sizes = [32, 16], strides = [1, 1]} : vector<32x32xf32> to vector<32x16xf32>
    %6 = vector.extract_strided_slice %3 {offsets = [0, 16], sizes = [32, 16], strides = [1, 1]} : vector<32x32xf32> to vector<32x16xf32>
    %7 = tpu.concatenate %4, %5, %1, %6, %4 in 1 : vector<32x1xf32>, vector<32x16xf32>, vector<32x128xf32>, vector<32x16xf32>, vector<32x1xf32> -> vector<32x162xf32>
    %c0_6 = arith.constant 0 : index
    %c0_7 = arith.constant 0 : index
    %8 = vector.load %arg5[%c0_6, %c0_7] : memref<8x32xbf16, #tpu.memory_space<vmem>>, vector<8x32xbf16>
    %9 = arith.truncf %7 : vector<32x162xf32> to vector<32x162xbf16>
    %cst_8 = arith.constant dense<0.000000e+00> : vector<8x162xf32>
    %10 = tpu.matmul %8, %9, %cst_8 {dimension_numbers = #tpu.dot_dimension_numbers<[1], [0], [0], [1], [0, 0, 1, 1], [], []>} : vector<8x32xbf16>, vector<32x162xbf16>, vector<8x162xf32> -> vector<8x162xf32>
    %c0_9 = arith.constant 0 : index
    %c0_10 = arith.constant 0 : index
    %11 = vector.load %arg6[%c0_9, %c0_10] : memref<8x1xf32, #tpu.memory_space<vmem>>, vector<8x1xf32>
    %12 = vector.broadcast %11 : vector<8x1xf32> to vector<8x162xf32>
    %13 = arith.addf %10, %12 : vector<8x162xf32>
    %cst_11 = arith.constant 0.000000e+00 : f32
    %14 = vector.broadcast %cst_11 : f32 to vector<8x162xf32>
    %15 = arith.maximumf %13, %14 : vector<8x162xf32>
    %16 = vector.extract_strided_slice %15 {offsets = [0, 0], sizes = [8, 128], strides = [1, 1]} : vector<8x162xf32> to vector<8x128xf32>
    %c0_12 = arith.constant 0 : index
    %c0_13 = arith.constant 0 : index
    %17 = vector.load %arg4[%c0_12, %c0_13] : memref<9x128xf32, #tpu.memory_space<vmem>>, vector<1x128xf32>
    %18 = vector.broadcast %17 : vector<1x128xf32> to vector<8x128xf32>
    %19 = arith.mulf %16, %18 : vector<8x128xf32>
    %c0_14 = arith.constant 0 : index
    %c0_15 = arith.constant 0 : index
    %20 = vector.load %arg12[%c0_14, %c0_15] : memref<72x128xf32, #tpu.memory_space<vmem>>, vector<8x128xf32>
    tpu.vector_store %arg12[%c0_14, %c0_15], %19 {strides = array<i32>} : memref<72x128xf32, #tpu.memory_space<vmem>>, vector<8x128xf32>,
    %21 = vector.extract_strided_slice %15 {offsets = [0, 1], sizes = [8, 128], strides = [1, 1]} : vector<8x162xf32> to vector<8x128xf32>
    %c1 = arith.constant 1 : index
    %c0_16 = arith.constant 0 : index
    %22 = vector.load %arg4[%c1, %c0_16] : memref<9x128xf32, #tpu.memory_space<vmem>>, vector<1x128xf32>
    %23 = vector.broadcast %22 : vector<1x128xf32> to vector<8x128xf32>
    %24 = arith.mulf %21, %23 : vector<8x128xf32>
    %c8 = arith.constant 8 : index
    %c0_17 = arith.constant 0 : index
    %25 = vector.load %arg12[%c8, %c0_17] : memref<72x128xf32, #tpu.memory_space<vmem>>, vector<8x128xf32>
    tpu.vector_store %arg12[%c8, %c0_17], %24 {strides = array<i32>} : memref<72x128xf32, #tpu.memory_space<vmem>>, vector<8x128xf32>,
    %26 = vector.extract_strided_slice %15 {offsets = [0, 2], sizes = [8, 128], strides = [1, 1]} : vector<8x162xf32> to vector<8x128xf32>
    %c2 = arith.constant 2 : index
    %c0_18 = arith.constant 0 : index
    %27 = vector.load %arg4[%c2, %c0_18] : memref<9x128xf32, #tpu.memory_space<vmem>>, vector<1x128xf32>
    %28 = vector.broadcast %27 : vector<1x128xf32> to vector<8x128xf32>
    %29 = arith.mulf %26, %28 : vector<8x128xf32>
    %c16 = arith.constant 16 : index
    %c0_19 = arith.constant 0 : index
    %30 = vector.load %arg12[%c16, %c0_19] : memref<72x128xf32, #tpu.memory_space<vmem>>, vector<8x128xf32>
    tpu.vector_store %arg12[%c16, %c0_19], %29 {strides = array<i32>} : memref<72x128xf32, #tpu.memory_space<vmem>>, vector<8x128xf32>,
    %31 = vector.extract_strided_slice %15 {offsets = [0, 16], sizes = [8, 128], strides = [1, 1]} : vector<8x162xf32> to vector<8x128xf32>
    %c3 = arith.constant 3 : index
    %c0_20 = arith.constant 0 : index
    %32 = vector.load %arg4[%c3, %c0_20] : memref<9x128xf32, #tpu.memory_space<vmem>>, vector<1x128xf32>
    %33 = vector.broadcast %32 : vector<1x128xf32> to vector<8x128xf32>
    %34 = arith.mulf %31, %33 : vector<8x128xf32>
    %c24 = arith.constant 24 : index
    %c0_21 = arith.constant 0 : index
    %35 = vector.load %arg12[%c24, %c0_21] : memref<72x128xf32, #tpu.memory_space<vmem>>, vector<8x128xf32>
    tpu.vector_store %arg12[%c24, %c0_21], %34 {strides = array<i32>} : memref<72x128xf32, #tpu.memory_space<vmem>>, vector<8x128xf32>,
    %36 = vector.extract_strided_slice %15 {offsets = [0, 17], sizes = [8, 128], strides = [1, 1]} : vector<8x162xf32> to vector<8x128xf32>
    %c32 = arith.constant 32 : index
    %c0_22 = arith.constant 0 : index
    %37 = vector.load %arg12[%c32, %c0_22] : memref<72x128xf32, #tpu.memory_space<vmem>>, vector<8x128xf32>
    tpu.vector_store %arg12[%c32, %c0_22], %36 {strides = array<i32>} : memref<72x128xf32, #tpu.memory_space<vmem>>, vector<8x128xf32>,
    %38 = vector.extract_strided_slice %15 {offsets = [0, 18], sizes = [8, 128], strides = [1, 1]} : vector<8x162xf32> to vector<8x128xf32>
    %c5 = arith.constant 5 : index
    %c0_23 = arith.constant 0 : index
    %39 = vector.load %arg4[%c5, %c0_23] : memref<9x128xf32, #tpu.memory_space<vmem>>, vector<1x128xf32>
    %40 = vector.broadcast %39 : vector<1x128xf32> to vector<8x128xf32>
    %41 = arith.mulf %38, %40 : vector<8x128xf32>
    %c40 = arith.constant 40 : index
    %c0_24 = arith.constant 0 : index
    %42 = vector.load %arg12[%c40, %c0_24] : memref<72x128xf32, #tpu.memory_space<vmem>>, vector<8x128xf32>
    tpu.vector_store %arg12[%c40, %c0_24], %41 {strides = array<i32>} : memref<72x128xf32, #tpu.memory_space<vmem>>, vector<8x128xf32>,
    %43 = vector.extract_strided_slice %15 {offsets = [0, 32], sizes = [8, 128], strides = [1, 1]} : vector<8x162xf32> to vector<8x128xf32>
    %c6 = arith.constant 6 : index
    %c0_25 = arith.constant 0 : index
    %44 = vector.load %arg4[%c6, %c0_25] : memref<9x128xf32, #tpu.memory_space<vmem>>, vector<1x128xf32>
    %45 = vector.broadcast %44 : vector<1x128xf32> to vector<8x128xf32>
    %46 = arith.mulf %43, %45 : vector<8x128xf32>
    %c48 = arith.constant 48 : index
    %c0_26 = arith.constant 0 : index
    %47 = vector.load %arg12[%c48, %c0_26] : memref<72x128xf32, #tpu.memory_space<vmem>>, vector<8x128xf32>
    tpu.vector_store %arg12[%c48, %c0_26], %46 {strides = array<i32>} : memref<72x128xf32, #tpu.memory_space<vmem>>, vector<8x128xf32>,
    %48 = vector.extract_strided_slice %15 {offsets = [0, 33], sizes = [8, 128], strides = [1, 1]} : vector<8x162xf32> to vector<8x128xf32>
    %c7 = arith.constant 7 : index
    %c0_27 = arith.constant 0 : index
    %49 = vector.load %arg4[%c7, %c0_27] : memref<9x128xf32, #tpu.memory_space<vmem>>, vector<1x128xf32>
    %50 = vector.broadcast %49 : vector<1x128xf32> to vector<8x128xf32>
    %51 = arith.mulf %48, %50 : vector<8x128xf32>
    %c56 = arith.constant 56 : index
    %c0_28 = arith.constant 0 : index
    %52 = vector.load %arg12[%c56, %c0_28] : memref<72x128xf32, #tpu.memory_space<vmem>>, vector<8x128xf32>
    tpu.vector_store %arg12[%c56, %c0_28], %51 {strides = array<i32>} : memref<72x128xf32, #tpu.memory_space<vmem>>, vector<8x128xf32>,
    %53 = vector.extract_strided_slice %15 {offsets = [0, 34], sizes = [8, 128], strides = [1, 1]} : vector<8x162xf32> to vector<8x128xf32>
    %c8_29 = arith.constant 8 : index
    %c0_30 = arith.constant 0 : index
    %54 = vector.load %arg4[%c8_29, %c0_30] : memref<9x128xf32, #tpu.memory_space<vmem>>, vector<1x128xf32>
    %55 = vector.broadcast %54 : vector<1x128xf32> to vector<8x128xf32>
    %56 = arith.mulf %53, %55 : vector<8x128xf32>
    %c64 = arith.constant 64 : index
    %c0_31 = arith.constant 0 : index
    %57 = vector.load %arg12[%c64, %c0_31] : memref<72x128xf32, #tpu.memory_space<vmem>>, vector<8x128xf32>
    tpu.vector_store %arg12[%c64, %c0_31], %56 {strides = array<i32>} : memref<72x128xf32, #tpu.memory_space<vmem>>, vector<8x128xf32>,
    %c0_32 = arith.constant 0 : index
    %c0_33 = arith.constant 0 : index
    %58 = vector.load %arg7[%c0_32, %c0_33] : memref<8x72xbf16, #tpu.memory_space<vmem>>, vector<8x72xbf16>
    %c0_34 = arith.constant 0 : index
    %c0_35 = arith.constant 0 : index
    %59 = vector.load %arg12[%c0_34, %c0_35] : memref<72x128xf32, #tpu.memory_space<vmem>>, vector<72x128xf32>
    %60 = arith.truncf %59 : vector<72x128xf32> to vector<72x128xbf16>
    %cst_36 = arith.constant dense<0.000000e+00> : vector<8x128xf32>
    %61 = tpu.matmul %58, %60, %cst_36 {dimension_numbers = #tpu.dot_dimension_numbers<[1], [0], [0], [1], [0, 0, 1, 1], [], []>} : vector<8x72xbf16>, vector<72x128xbf16>, vector<8x128xf32> -> vector<8x128xf32>
    %c0_37 = arith.constant 0 : index
    %c0_38 = arith.constant 0 : index
    %62 = vector.load %arg8[%c0_37, %c0_38] : memref<8x1xf32, #tpu.memory_space<vmem>>, vector<8x1xf32>
    %63 = vector.broadcast %62 : vector<8x1xf32> to vector<8x128xf32>
    %64 = arith.addf %61, %63 : vector<8x128xf32>
    %cst_39 = arith.constant 0.000000e+00 : f32
    %65 = vector.broadcast %cst_39 : f32 to vector<8x128xf32>
    %66 = arith.maximumf %64, %65 : vector<8x128xf32>
    %c0_40 = arith.constant 0 : index
    %c0_41 = arith.constant 0 : index
    %67 = vector.load %arg9[%c0_40, %c0_41] : memref<32x8xbf16, #tpu.memory_space<vmem>>, vector<32x8xbf16>
    %68 = arith.truncf %66 : vector<8x128xf32> to vector<8x128xbf16>
    %cst_42 = arith.constant dense<0.000000e+00> : vector<32x128xf32>
    %69 = tpu.matmul %67, %68, %cst_42 {dimension_numbers = #tpu.dot_dimension_numbers<[1], [0], [0], [1], [0, 0, 1, 1], [], []>} : vector<32x8xbf16>, vector<8x128xbf16>, vector<32x128xf32> -> vector<32x128xf32>
    %c0_43 = arith.constant 0 : index
    %c0_44 = arith.constant 0 : index
    %70 = vector.load %arg10[%c0_43, %c0_44] : memref<32x1xf32, #tpu.memory_space<vmem>>, vector<32x1xf32>
    %71 = vector.broadcast %70 : vector<32x1xf32> to vector<32x128xf32>
    %72 = arith.addf %69, %71 : vector<32x128xf32>
    %73 = arith.addf %72, %1 : vector<32x128xf32>
    %c0_45 = arith.constant 0 : index
    %c0_46 = arith.constant 0 : index
    %c0_47 = arith.constant 0 : index
    %74 = vector.load %arg11[%c0_45, %c0_46, %c0_47] : memref<1x32x128xf32, #tpu.memory_space<vmem>>, vector<1x32x128xf32>
    %75 = vector.shape_cast %74 : vector<1x32x128xf32> to vector<32x128xf32>
    %76 = vector.shape_cast %73 : vector<32x128xf32> to vector<1x32x128xf32>
    tpu.vector_store %arg11[%c0_45, %c0_46, %c0_47], %76 {strides = array<i32>} : memref<1x32x128xf32, #tpu.memory_space<vmem>>, vector<1x32x128xf32>,
    return
  }
  func.func @transform_0(%arg0: i32, %arg1: i32) -> (i32, i32, i32) {
    %c0_i32 = arith.constant 0 : i32
    %c0_i32_0 = arith.constant 0 : i32
    return %arg0, %c0_i32, %arg1 : i32, i32, i32
  }
  func.func @transform_1(%arg0: i32, %arg1: i32) -> (i32, i32, i32, i32) {
    %c0_i32 = arith.constant 0 : i32
    %c0_i32_0 = arith.constant 0 : i32
    %c0_i32_1 = arith.constant 0 : i32
    return %arg0, %arg1, %c0_i32, %c0_i32_0 : i32, i32, i32, i32
  }
  func.func @transform_2(%arg0: i32, %arg1: i32) -> (i32, i32) {
    %c0_i32 = arith.constant 0 : i32
    %c0_i32_0 = arith.constant 0 : i32
    return %c0_i32, %arg1 : i32, i32
  }
  func.func @transform_3(%arg0: i32, %arg1: i32) -> (i32, i32) {
    %c0_i32 = arith.constant 0 : i32
    %c0_i32_0 = arith.constant 0 : i32
    %c0_i32_1 = arith.constant 0 : i32
    return %c0_i32, %c0_i32_0 : i32, i32
  }
  func.func @transform_4(%arg0: i32, %arg1: i32) -> (i32, i32) {
    %c0_i32 = arith.constant 0 : i32
    %c0_i32_0 = arith.constant 0 : i32
    %c0_i32_1 = arith.constant 0 : i32
    return %c0_i32, %c0_i32_0 : i32, i32
  }
  func.func @transform_5(%arg0: i32, %arg1: i32) -> (i32, i32) {
    %c0_i32 = arith.constant 0 : i32
    %c0_i32_0 = arith.constant 0 : i32
    %c0_i32_1 = arith.constant 0 : i32
    return %c0_i32, %c0_i32_0 : i32, i32
  }
  func.func @transform_6(%arg0: i32, %arg1: i32) -> (i32, i32) {
    %c0_i32 = arith.constant 0 : i32
    %c0_i32_0 = arith.constant 0 : i32
    %c0_i32_1 = arith.constant 0 : i32
    return %c0_i32, %c0_i32_0 : i32, i32
  }
  func.func @transform_7(%arg0: i32, %arg1: i32) -> (i32, i32) {
    %c0_i32 = arith.constant 0 : i32
    %c0_i32_0 = arith.constant 0 : i32
    %c0_i32_1 = arith.constant 0 : i32
    return %c0_i32, %c0_i32_0 : i32, i32
  }
  func.func @transform_8(%arg0: i32, %arg1: i32) -> (i32, i32) {
    %c0_i32 = arith.constant 0 : i32
    %c0_i32_0 = arith.constant 0 : i32
    %c0_i32_1 = arith.constant 0 : i32
    return %c0_i32, %c0_i32_0 : i32, i32
  }
  func.func @transform_9(%arg0: i32, %arg1: i32) -> (i32, i32, i32) {
    %c0_i32 = arith.constant 0 : i32
    %c0_i32_0 = arith.constant 0 : i32
    return %arg0, %c0_i32, %arg1 : i32, i32, i32
  }
}

</mosaic_0001>

<llo_original>
// kernel: no_relu_bottleneck.1
$region0: #{no_relu_bottleneck.1}
  #allocation0 [shape = 'u32[]', space=smem, size = 0x4, offset = 0x4, fixed_abs, tag = 'smem constant byte address 0x4 - core index']
  #allocation1 [shape = 'u32[144,128]{1,0:T(1,128)}', space=vmem, size = 0x12000, scoped, tag = 'internal scratch']
  #allocation2 [shape = 'f32[72,128]{1,0:T(8,128)}', space=vmem, size = 0x9000, scoped, tag = 'scratch operand']
  %s0 = inlined_call_operand.vmem [shape: f32[2,32,256], index: 0, kind: input, shape index: {}]
  %s1 = inlined_call_operand.vmem [shape: f32[2,2,32,32], index: 1, kind: input, shape index: {}]
  %s2 = inlined_call_operand.vmem [shape: f32[9,256], index: 2, kind: input, shape index: {}]
  %s3 = inlined_call_operand.vmem [shape: bf16[8,32], index: 3, kind: input, shape index: {}]
  %s4 = inlined_call_operand.vmem [shape: f32[8,1], index: 4, kind: input, shape index: {}]
  %s5 = inlined_call_operand.vmem [shape: bf16[8,72], index: 5, kind: input, shape index: {}]
  %s6 = inlined_call_operand.vmem [shape: f32[8,1], index: 6, kind: input, shape index: {}]
  %s7 = inlined_call_operand.vmem [shape: bf16[32,8], index: 7, kind: input, shape index: {}]
  %s8 = inlined_call_operand.vmem [shape: f32[32,1], index: 8, kind: input, shape index: {}]
  %s9 = inlined_call_operand.vmem [shape: f32[2,32,256], index: 9, kind: output, shape index: {}]
  %s10 = sld [smem:[#allocation0]]
  $region179: #{no_relu_bottleneck.1} parent=0
    _
  %s12 = ssub.s32 1, %s10
  %s13 = scalar_select 0, %s12, %s10
  $region1: #{no_relu_bottleneck.1} parent=0
    #allocation3 [shape = 'u8[32768]{0}', space=vmem, size = 0x8000, scoped, tag = 'input window, operand 0']
    #allocation4 [shape = 'u8[16384]{0}', space=vmem, size = 0x4000, scoped, tag = 'input window, operand 2']
    #allocation5 [shape = 'u8[32768]{0}', space=vmem, size = 0x8000, scoped, tag = 'output window, operand 0']
    loop: start=0, step=1, limit=6
    $region2: #{no_relu_bottleneck.1} parent=1 // loop_pre_header
      _
    $region3: #{no_relu_bottleneck.1} parent=1 // loop_header
      %s15 = sphi 0, %s19
      %p16 = scmp.ge.s32.totalorder %s15, 6
      %s22 = sphi 0, %s34
      %s23 = sphi 0, %s30
      %s24 = sphi 0, %s22
      %s25 = sphi 0, %s23
      %s26 = sphi 0, %s24
      %s27 = sphi 0, %s25
      %s39 = sphi 0, %s41
      %s42 = sphi 0, %s39
      %s43 = sphi 0, %s42
      %s59 = sphi 0, %s43
      %s67 = sphi 0, %s69
      %s70 = sphi 0, %s67
      %s71 = sphi 0, %s70
      %s87 = sphi 0, %s71
      %s93 = sphi 0, %s95
      %s96 = sphi 0, %s93
      %s97 = sphi 0, %s96
      %s113 = sphi 0, %s97
      %s117 = sphi 0, %s117
      %s119 = sphi 0, %s117
      %s120 = sphi 0, %s119
      %s134 = sphi 0, %s120
      %s138 = sphi 0, %s138
      %s140 = sphi 0, %s138
      %s141 = sphi 0, %s140
      %s155 = sphi 0, %s141
      %s159 = sphi 0, %s159
      %s161 = sphi 0, %s159
      %s162 = sphi 0, %s161
      %s176 = sphi 0, %s162
      %s180 = sphi 0, %s180
      %s182 = sphi 0, %s180
      %s183 = sphi 0, %s182
      %s197 = sphi 0, %s183
      %s201 = sphi 0, %s201
      %s203 = sphi 0, %s201
      %s204 = sphi 0, %s203
      %s218 = sphi 0, %s204
      %s222 = sphi 0, %s222
      %s224 = sphi 0, %s222
      %s225 = sphi 0, %s224
      %s239 = sphi 0, %s225
      %s247 = sphi 0, %s249
      %s250 = sphi 0, %s247
      %s251 = sphi 0, %s250
      %s267 = sphi 0, %s251
    $region4: #{no_relu_bottleneck.1} parent=1 // loop_header_branch
      %18 = sbr.rel (%p16) target = $region8
    $region5: #{no_relu_bottleneck.1} parent=1 // loop_body
      %s20 = ssub.s32 %s15, 1
      %s21 = ssub.s32 %s15, 2
      %s28 = sadd.s32 1, %s23
      %p29 = scmp.ge.s32.totalorder %s28, 2
      %s30 = scalar_select %p29, 0, %s28
      %s31 = sadd.s32 1, %s22
      %s32 = scalar_select %p29, %s31, %s22
      %p33 = scmp.ge.s32.totalorder %s32, 2
      %s34 = scalar_select %p33, 0, %s32
      %s35 = ssub.s32 %s22, %s34
      %s36 = ssub.s32 %s23, %s30
      %s37 = sor.u32 %s35, %s36
      %p38 = scmp.eq.s32.totalorder %s37, 0
      %s40 = sadd.s32 %s39, 1
      %s41 = scalar_select %p38, %s39, %s40
      %p44 = pneg %p38
      %p45 = scmp.eq.s32.totalorder %s15, 3
      %p46 = por %p44, %p45
      %p47 = scmp.ne.s32.totalorder %s39, %s42
      %p48 = scmp.eq.s32.totalorder %s15, 0
      %p49 = por %p47, %p48
      %p50 = scmp.ne.s32.totalorder %s39, %s42
      %p51 = scmp.eq.s32.totalorder %s20, 3
      %p52 = por %p50, %p51
      %p53 = scmp.ne.s32.totalorder %s42, %s43
      %p54 = scmp.eq.s32.totalorder %s20, 0
      %p55 = por %p53, %p54
      %p56 = scmp.ne.s32.totalorder %s42, %s43
      %p57 = scmp.eq.s32.totalorder %s21, 3
      %p58 = por %p56, %p57
      %p60 = scmp.ne.s32.totalorder %s43, %s59
      %p61 = scmp.eq.s32.totalorder %s21, 0
      %p62 = por %p60, %p61
      %s63 = ssub.s32 %s22, %s34
      %s64 = ssub.s32 %s23, %s30
      %s65 = sor.u32 %s63, %s64
      %p66 = scmp.eq.s32.totalorder %s65, 0
      %s68 = sadd.s32 %s67, 1
      %s69 = scalar_select %p66, %s67, %s68
      %p72 = pneg %p66
      %p73 = scmp.eq.s32.totalorder %s15, 3
      %p74 = por %p72, %p73
      %p75 = scmp.ne.s32.totalorder %s67, %s70
      %p76 = scmp.eq.s32.totalorder %s15, 0
      %p77 = por %p75, %p76
      %p78 = scmp.ne.s32.totalorder %s67, %s70
      %p79 = scmp.eq.s32.totalorder %s20, 3
      %p80 = por %p78, %p79
      %p81 = scmp.ne.s32.totalorder %s70, %s71
      %p82 = scmp.eq.s32.totalorder %s20, 0
      %p83 = por %p81, %p82
      %p84 = scmp.ne.s32.totalorder %s70, %s71
      %p85 = scmp.eq.s32.totalorder %s21, 3
      %p86 = por %p84, %p85
      %p88 = scmp.ne.s32.totalorder %s71, %s87
      %p89 = scmp.eq.s32.totalorder %s21, 0
      %p90 = por %p88, %p89
      %s91 = ssub.s32 %s23, %s30
      %p92 = scmp.eq.s32.totalorder %s91, 0
      %s94 = sadd.s32 %s93, 1
      %s95 = scalar_select %p92, %s93, %s94
      %p98 = pneg %p92
      %p99 = scmp.eq.s32.totalorder %s15, 3
      %p100 = por %p98, %p99
      %p101 = scmp.ne.s32.totalorder %s93, %s96
      %p102 = scmp.eq.s32.totalorder %s15, 0
      %p103 = por %p101, %p102
      %p104 = scmp.ne.s32.totalorder %s93, %s96
      %p105 = scmp.eq.s32.totalorder %s20, 3
      %p106 = por %p104, %p105
      %p107 = scmp.ne.s32.totalorder %s96, %s97
      %p108 = scmp.eq.s32.totalorder %s20, 0
      %p109 = por %p107, %p108
      %p110 = scmp.ne.s32.totalorder %s96, %s97
      %p111 = scmp.eq.s32.totalorder %s21, 3
      %p112 = por %p110, %p111
      %p114 = scmp.ne.s32.totalorder %s97, %s113
      %p115 = scmp.eq.s32.totalorder %s21, 0
      %p116 = por %p114, %p115
      %s118 = sadd.s32 %s117, 1
      %p121 = scmp.eq.s32.totalorder %s15, 3
      %p122 = scmp.ne.s32.totalorder %s117, %s119
      %p123 = scmp.eq.s32.totalorder %s15, 0
      %p124 = por %p122, %p123
      %p125 = scmp.ne.s32.totalorder %s117, %s119
      %p126 = scmp.eq.s32.totalorder %s20, 3
      %p127 = por %p125, %p126
      %p128 = scmp.ne.s32.totalorder %s119, %s120
      %p129 = scmp.eq.s32.totalorder %s20, 0
      %p130 = por %p128, %p129
      %p131 = scmp.ne.s32.totalorder %s119, %s120
      %p132 = scmp.eq.s32.totalorder %s21, 3
      %p133 = por %p131, %p132
      %p135 = scmp.ne.s32.totalorder %s120, %s134
      %p136 = scmp.eq.s32.totalorder %s21, 0
      %p137 = por %p135, %p136
      %s139 = sadd.s32 %s138, 1
      %p142 = scmp.eq.s32.totalorder %s15, 3
      %p143 = scmp.ne.s32.totalorder %s138, %s140
      %p144 = scmp.eq.s32.totalorder %s15, 0
      %p145 = por %p143, %p144
      %p146 = scmp.ne.s32.totalorder %s138, %s140
      %p147 = scmp.eq.s32.totalorder %s20, 3
      %p148 = por %p146, %p147
      %p149 = scmp.ne.s32.totalorder %s140, %s141
      %p150 = scmp.eq.s32.totalorder %s20, 0
      %p151 = por %p149, %p150
      %p152 = scmp.ne.s32.totalorder %s140, %s141
      %p153 = scmp.eq.s32.totalorder %s21, 3
      %p154 = por %p152, %p153
      %p156 = scmp.ne.s32.totalorder %s141, %s155
      %p157 = scmp.eq.s32.totalorder %s21, 0
      %p158 = por %p156, %p157
      %s160 = sadd.s32 %s159, 1
      %p163 = scmp.eq.s32.totalorder %s15, 3
      %p164 = scmp.ne.s32.totalorder %s159, %s161
      %p165 = scmp.eq.s32.totalorder %s15, 0
      %p166 = por %p164, %p165
      %p167 = scmp.ne.s32.totalorder %s159, %s161
      %p168 = scmp.eq.s32.totalorder %s20, 3
      %p169 = por %p167, %p168
      %p170 = scmp.ne.s32.totalorder %s161, %s162
      %p171 = scmp.eq.s32.totalorder %s20, 0
      %p172 = por %p170, %p171
      %p173 = scmp.ne.s32.totalorder %s161, %s162
      %p174 = scmp.eq.s32.totalorder %s21, 3
      %p175 = por %p173, %p174
      %p177 = scmp.ne.s32.totalorder %s162, %s176
      %p178 = scmp.eq.s32.totalorder %s21, 0
      %p179 = por %p177, %p178
      %s181 = sadd.s32 %s180, 1
      %p184 = scmp.eq.s32.totalorder %s15, 3
      %p185 = scmp.ne.s32.totalorder %s180, %s182
      %p186 = scmp.eq.s32.totalorder %s15, 0
      %p187 = por %p185, %p186
      %p188 = scmp.ne.s32.totalorder %s180, %s182
      %p189 = scmp.eq.s32.totalorder %s20, 3
      %p190 = por %p188, %p189
      %p191 = scmp.ne.s32.totalorder %s182, %s183
      %p192 = scmp.eq.s32.totalorder %s20, 0
      %p193 = por %p191, %p192
      %p194 = scmp.ne.s32.totalorder %s182, %s183
      %p195 = scmp.eq.s32.totalorder %s21, 3
      %p196 = por %p194, %p195
      %p198 = scmp.ne.s32.totalorder %s183, %s197
      %p199 = scmp.eq.s32.totalorder %s21, 0
      %p200 = por %p198, %p199
      %s202 = sadd.s32 %s201, 1
      %p205 = scmp.eq.s32.totalorder %s15, 3
      %p206 = scmp.ne.s32.totalorder %s201, %s203
      %p207 = scmp.eq.s32.totalorder %s15, 0
      %p208 = por %p206, %p207
      %p209 = scmp.ne.s32.totalorder %s201, %s203
      %p210 = scmp.eq.s32.totalorder %s20, 3
      %p211 = por %p209, %p210
      %p212 = scmp.ne.s32.totalorder %s203, %s204
      %p213 = scmp.eq.s32.totalorder %s20, 0
      %p214 = por %p212, %p213
      %p215 = scmp.ne.s32.totalorder %s203, %s204
      %p216 = scmp.eq.s32.totalorder %s21, 3
      %p217 = por %p215, %p216
      %p219 = scmp.ne.s32.totalorder %s204, %s218
      %p220 = scmp.eq.s32.totalorder %s21, 0
      %p221 = por %p219, %p220
      %s223 = sadd.s32 %s222, 1
      %p226 = scmp.eq.s32.totalorder %s15, 3
      %p227 = scmp.ne.s32.totalorder %s222, %s224
      %p228 = scmp.eq.s32.totalorder %s15, 0
      %p229 = por %p227, %p228
      %p230 = scmp.ne.s32.totalorder %s222, %s224
      %p231 = scmp.eq.s32.totalorder %s20, 3
      %p232 = por %p230, %p231
      %p233 = scmp.ne.s32.totalorder %s224, %s225
      %p234 = scmp.eq.s32.totalorder %s20, 0
      %p235 = por %p233, %p234
      %p236 = scmp.ne.s32.totalorder %s224, %s225
      %p237 = scmp.eq.s32.totalorder %s21, 3
      %p238 = por %p236, %p237
      %p240 = scmp.ne.s32.totalorder %s225, %s239
      %p241 = scmp.eq.s32.totalorder %s21, 0
      %p242 = por %p240, %p241
      %s243 = ssub.s32 %s22, %s34
      %s244 = ssub.s32 %s23, %s30
      %s245 = sor.u32 %s243, %s244
      %p246 = scmp.eq.s32.totalorder %s245, 0
      %s248 = sadd.s32 %s247, 1
      %s249 = scalar_select %p246, %s247, %s248
      %p252 = pneg %p246
      %p253 = scmp.eq.s32.totalorder %s15, 3
      %p254 = por %p252, %p253
      %p255 = scmp.ne.s32.totalorder %s247, %s250
      %p256 = scmp.eq.s32.totalorder %s15, 0
      %p257 = por %p255, %p256
      %p258 = scmp.ne.s32.totalorder %s247, %s250
      %p259 = scmp.eq.s32.totalorder %s20, 3
      %p260 = por %p258, %p259
      %p261 = scmp.ne.s32.totalorder %s250, %s251
      %p262 = scmp.eq.s32.totalorder %s20, 0
      %p263 = por %p261, %p262
      %p264 = scmp.ne.s32.totalorder %s250, %s251
      %p265 = scmp.eq.s32.totalorder %s21, 3
      %p266 = por %p264, %p265
      %p268 = scmp.ne.s32.totalorder %s251, %s267
      %p269 = scmp.eq.s32.totalorder %s21, 0
      %p270 = por %p268, %p269
      %p271 = scmp.le.s32.totalorder 1, %s15
      %p272 = scmp.lt.s32.totalorder %s15, 5
      %p273 = pnand %p271, %p272
      %p274 = pneg %p273
      // Predicated region
      $region9: #{no_relu_bottleneck.1} parent=5 // pred_check
        _
      $region10: #{no_relu_bottleneck.1} parent=5 // pred_check_branch
        %276 = sbr.rel (%p273) target = $region12
      $region11: #{no_relu_bottleneck.1} parent=5 // pred_region
        %s277 = ssub.s32 %s15, 1
        // Predicated region
        $region13: #{no_relu_bottleneck.1} parent=11 // pred_check
          %p278 = pneg %p130
        $region14: #{no_relu_bottleneck.1} parent=11 // pred_check_branch
          %280 = sbr.rel (%p278) target = $region16
        $region15: #{no_relu_bottleneck.1} parent=11 // pred_region
          _
        $region16: #{no_relu_bottleneck.1} parent=11 // pred_fallthru
          _
        // Predicated region
        $region17: #{no_relu_bottleneck.1} parent=11 // pred_check
          %p281 = pneg %p151
        $region18: #{no_relu_bottleneck.1} parent=11 // pred_check_branch
          %283 = sbr.rel (%p281) target = $region20
        $region19: #{no_relu_bottleneck.1} parent=11 // pred_region
          _
        $region20: #{no_relu_bottleneck.1} parent=11 // pred_fallthru
          _
        // Predicated region
        $region21: #{no_relu_bottleneck.1} parent=11 // pred_check
          %p284 = pneg %p172
        $region22: #{no_relu_bottleneck.1} parent=11 // pred_check_branch
          %286 = sbr.rel (%p284) target = $region24
        $region23: #{no_relu_bottleneck.1} parent=11 // pred_region
          _
        $region24: #{no_relu_bottleneck.1} parent=11 // pred_fallthru
          _
        // Predicated region
        $region25: #{no_relu_bottleneck.1} parent=11 // pred_check
          %p287 = pneg %p193
        $region26: #{no_relu_bottleneck.1} parent=11 // pred_check_branch
          %289 = sbr.rel (%p287) target = $region28
        $region27: #{no_relu_bottleneck.1} parent=11 // pred_region
          _
        $region28: #{no_relu_bottleneck.1} parent=11 // pred_fallthru
          _
        // Predicated region
        $region29: #{no_relu_bottleneck.1} parent=11 // pred_check
          %p290 = pneg %p214
        $region30: #{no_relu_bottleneck.1} parent=11 // pred_check_branch
          %292 = sbr.rel (%p290) target = $region32
        $region31: #{no_relu_bottleneck.1} parent=11 // pred_region
          _
        $region32: #{no_relu_bottleneck.1} parent=11 // pred_fallthru
          _
        // Predicated region
        $region33: #{no_relu_bottleneck.1} parent=11 // pred_check
          %p293 = pneg %p235
        $region34: #{no_relu_bottleneck.1} parent=11 // pred_check_branch
          %295 = sbr.rel (%p293) target = $region36
        $region35: #{no_relu_bottleneck.1} parent=11 // pred_region
          _
        $region36: #{no_relu_bottleneck.1} parent=11 // pred_fallthru
          _
      $region12: #{no_relu_bottleneck.1} parent=5 // pred_fallthru
        _
      %p296 = scmp.lt.s32.totalorder %s15, 4
      // Predicated region
      $region37: #{no_relu_bottleneck.1} parent=5 // pred_check
        %p297 = pneg %p296
      $region38: #{no_relu_bottleneck.1} parent=5 // pred_check_branch
        %299 = sbr.rel (%p297) target = $region40
      $region39: #{no_relu_bottleneck.1} parent=5 // pred_region
        // Predicated region
        $region41: #{no_relu_bottleneck.1} parent=39 // pred_check
          %p300 = pneg %p49
        $region42: #{no_relu_bottleneck.1} parent=39 // pred_check_branch
          %302 = sbr.rel (%p300) target = $region44
        $region43: #{no_relu_bottleneck.1} parent=39 // pred_region
          %s303 = sand.u32 %s39, 1
          %s304 = sand.u32 %s39, 1
          %s305 = smul.addr %s304, 32
          %s306 = scalar_lea.vmem [#allocation3], %s305
          %s307 = smul.addr %s22, 8
          %s308 = sadd.s32 %s23, %s307
          %s309 = smul.addr %s308, 8
          %s310 = scalar_lea.vmem %s0, %s309
          // Predicated region
          $region45: #{no_relu_bottleneck.1} parent=43 // pred_check
            _
          $region46: #{no_relu_bottleneck.1} parent=43 // pred_check_branch
            %312 = sbr.rel (0) target = $region48
          $region47: #{no_relu_bottleneck.1} parent=43 // pred_region
            // Predicated region
            $region49: #{no_relu_bottleneck.1} parent=47 // pred_check
              _
            $region50: #{no_relu_bottleneck.1} parent=47 // pred_check_branch
              %314 = sbr.rel (0) target = $region52
            $region51: #{no_relu_bottleneck.1} parent=47 // pred_region
              // Predicated region
              $region64: #{no_relu_bottleneck.1} parent=51 // pred_check
                _
              $region65: #{no_relu_bottleneck.1} parent=51 // pred_check_branch
                %335 = sbr.rel (0) target = $region67
              $region66: #{no_relu_bottleneck.1} parent=51 // pred_region
                loop: start=0, step=1, limit=1
                $region68: #{no_relu_bottleneck.1} parent=66 // loop_pre_header
                  _
                $region69: #{no_relu_bottleneck.1} parent=66 // loop_header
                  %s337 = sphi 0, %s341
                  %p338 = scmp.ge.s32.totalorder %s337, 1
                  %s342 = sphi %s310, %s310
                  %s343 = sphi %s306, %s306
                $region70: #{no_relu_bottleneck.1} parent=66 // loop_header_branch
                  %340 = sbr.rel (%p338) target = $region74
                $region71: #{no_relu_bottleneck.1} parent=66 // loop_body
                  %v344 = vld [vmem:[%s342] sm:$0xff]
                  %345 = vst [vmem:[%s343] sm:$0xff] %v344
                  %v346 = vld [vmem:[%s342 + $0x10] sm:$0xff]
                  %347 = vst [vmem:[%s343 + $0x8] sm:$0xff] %v346
                  %v348 = vld [vmem:[%s342 + $0x20] sm:$0xff]
                  %349 = vst [vmem:[%s343 + $0x10] sm:$0xff] %v348
                  %v350 = vld [vmem:[%s342 + $0x30] sm:$0xff]
                  %351 = vst [vmem:[%s343 + $0x18] sm:$0xff] %v350
                $region72: #{no_relu_bottleneck.1} parent=66 // loop_footer
                  %s341 = sadd.s32 1, %s337
                $region73: #{no_relu_bottleneck.1} parent=66 // loop_footer_branch
                  %336 = sbr.rel target = $region69
                $region74: #{no_relu_bottleneck.1} parent=66 // loop_exit
                  _
              $region67: #{no_relu_bottleneck.1} parent=51 // pred_fallthru
                _
              // Predicated region
              $region75: #{no_relu_bottleneck.1} parent=51 // pred_check
                _
              $region76: #{no_relu_bottleneck.1} parent=51 // pred_check_branch
                %353 = sbr.rel target = $region78
              $region77: #{no_relu_bottleneck.1} parent=51 // pred_region
                _
              $region78: #{no_relu_bottleneck.1} parent=51 // pred_fallthru
                _
            $region52: #{no_relu_bottleneck.1} parent=47 // pred_fallthru
              _
            // Predicated region
            $region53: #{no_relu_bottleneck.1} parent=47 // pred_check
              _
            $region54: #{no_relu_bottleneck.1} parent=47 // pred_check_branch
              %316 = sbr.rel target = $region56
            $region55: #{no_relu_bottleneck.1} parent=47 // pred_region
              loop: start=0, step=1, limit=1
              $region57: #{no_relu_bottleneck.1} parent=55 // loop_pre_header
                _
              $region58: #{no_relu_bottleneck.1} parent=55 // loop_header
                %s319 = sphi 0, %s323
                %p320 = scmp.ge.s32.totalorder %s319, 1
                %s324 = sphi %s310, %s310
                %s325 = sphi %s306, %s306
              $region59: #{no_relu_bottleneck.1} parent=55 // loop_header_branch
                %322 = sbr.rel (%p320) target = $region63
              $region60: #{no_relu_bottleneck.1} parent=55 // loop_body
                %v326 = vld [vmem:[%s324] sm:$0xff]
                %327 = vst [vmem:[%s325] sm:$0xff] %v326
                %v328 = vld [vmem:[%s324 + $0x10] sm:$0xff]
                %329 = vst [vmem:[%s325 + $0x8] sm:$0xff] %v328
                %v330 = vld [vmem:[%s324 + $0x20] sm:$0xff]
                %331 = vst [vmem:[%s325 + $0x10] sm:$0xff] %v330
                %v332 = vld [vmem:[%s324 + $0x30] sm:$0xff]
                %333 = vst [vmem:[%s325 + $0x18] sm:$0xff] %v332
              $region61: #{no_relu_bottleneck.1} parent=55 // loop_footer
                %s323 = sadd.s32 1, %s319
              $region62: #{no_relu_bottleneck.1} parent=55 // loop_footer_branch
                %318 = sbr.rel target = $region58
              $region63: #{no_relu_bottleneck.1} parent=55 // loop_exit
                _
            $region56: #{no_relu_bottleneck.1} parent=47 // pred_fallthru
              _
          $region48: #{no_relu_bottleneck.1} parent=43 // pred_fallthru
            _
          %354 = vnop
        $region44: #{no_relu_bottleneck.1} parent=39 // pred_fallthru
          _
        // Predicated region
        $region79: #{no_relu_bottleneck.1} parent=39 // pred_check
          %p355 = pneg %p77
        $region80: #{no_relu_bottleneck.1} parent=39 // pred_check_branch
          %357 = sbr.rel (%p355) target = $region82
        $region81: #{no_relu_bottleneck.1} parent=39 // pred_region
          %p358 = scmp.lt.s32.totalorder %s22, 1
          %s359 = scalar_select %p358, %s22, 1
          %p360 = scmp.lt.s32.totalorder %s23, 1
          %s361 = scalar_select %p360, %s23, 1
          %s362 = smul.addr %s361, 4
          %s363 = smul.addr %s359, 8
          %s364 = sadd.s32 %s362, %s363
          %s365 = smul.addr %s364, 8
          %s366 = scalar_lea.vmem %s1, %s365
        $region82: #{no_relu_bottleneck.1} parent=39 // pred_fallthru
          _
        // Predicated region
        $region83: #{no_relu_bottleneck.1} parent=39 // pred_check
          %p367 = pneg %p103
        $region84: #{no_relu_bottleneck.1} parent=39 // pred_check_branch
          %369 = sbr.rel (%p367) target = $region86
        $region85: #{no_relu_bottleneck.1} parent=39 // pred_region
          %s370 = sand.u32 %s93, 1
          %s371 = sand.u32 %s93, 1
          %s372 = smul.addr %s371, 16
          %s373 = scalar_lea.vmem [#allocation4], %s372
          %s374 = smul.addr %s23, 8
          %s375 = scalar_lea.vmem %s2, %s374
          // Predicated region
          $region87: #{no_relu_bottleneck.1} parent=85 // pred_check
            _
          $region88: #{no_relu_bottleneck.1} parent=85 // pred_check_branch
            %377 = sbr.rel (0) target = $region90
          $region89: #{no_relu_bottleneck.1} parent=85 // pred_region
            // Predicated region
            $region91: #{no_relu_bottleneck.1} parent=89 // pred_check
              _
            $region92: #{no_relu_bottleneck.1} parent=89 // pred_check_branch
              %379 = sbr.rel (0) target = $region94
            $region93: #{no_relu_bottleneck.1} parent=89 // pred_region
              // Predicated region
              $region106: #{no_relu_bottleneck.1} parent=93 // pred_check
                _
              $region107: #{no_relu_bottleneck.1} parent=93 // pred_check_branch
                %396 = sbr.rel (0) target = $region109
              $region108: #{no_relu_bottleneck.1} parent=93 // pred_region
                loop: start=0, step=1, limit=1
                $region110: #{no_relu_bottleneck.1} parent=108 // loop_pre_header
                  _
                $region111: #{no_relu_bottleneck.1} parent=108 // loop_header
                  %s398 = sphi 0, %s402
                  %p399 = scmp.ge.s32.totalorder %s398, 1
                  %s403 = sphi %s375, %s375
                  %s404 = sphi %s373, %s373
                $region112: #{no_relu_bottleneck.1} parent=108 // loop_header_branch
                  %401 = sbr.rel (%p399) target = $region116
                $region113: #{no_relu_bottleneck.1} parent=108 // loop_body
                  %v405 = vld [vmem:[%s403] sm:$0xff]
                  %406 = vst [vmem:[%s404] sm:$0xff] %v405
                  %v407 = vld [vmem:[%s403 + $0x10] sm:$0xff]
                  %408 = vst [vmem:[%s404 + $0x8] sm:$0xff] %v407
                $region114: #{no_relu_bottleneck.1} parent=108 // loop_footer
                  %s402 = sadd.s32 1, %s398
                $region115: #{no_relu_bottleneck.1} parent=108 // loop_footer_branch
                  %397 = sbr.rel target = $region111
                $region116: #{no_relu_bottleneck.1} parent=108 // loop_exit
                  _
              $region109: #{no_relu_bottleneck.1} parent=93 // pred_fallthru
                _
              // Predicated region
              $region117: #{no_relu_bottleneck.1} parent=93 // pred_check
                _
              $region118: #{no_relu_bottleneck.1} parent=93 // pred_check_branch
                %410 = sbr.rel target = $region120
              $region119: #{no_relu_bottleneck.1} parent=93 // pred_region
                _
              $region120: #{no_relu_bottleneck.1} parent=93 // pred_fallthru
                _
            $region94: #{no_relu_bottleneck.1} parent=89 // pred_fallthru
              _
            // Predicated region
            $region95: #{no_relu_bottleneck.1} parent=89 // pred_check
              _
            $region96: #{no_relu_bottleneck.1} parent=89 // pred_check_branch
              %381 = sbr.rel target = $region98
            $region97: #{no_relu_bottleneck.1} parent=89 // pred_region
              loop: start=0, step=1, limit=1
              $region99: #{no_relu_bottleneck.1} parent=97 // loop_pre_header
                _
              $region100: #{no_relu_bottleneck.1} parent=97 // loop_header
                %s384 = sphi 0, %s388
                %p385 = scmp.ge.s32.totalorder %s384, 1
                %s389 = sphi %s375, %s375
                %s390 = sphi %s373, %s373
              $region101: #{no_relu_bottleneck.1} parent=97 // loop_header_branch
                %387 = sbr.rel (%p385) target = $region105
              $region102: #{no_relu_bottleneck.1} parent=97 // loop_body
                %v391 = vld [vmem:[%s389] sm:$0xff]
                %392 = vst [vmem:[%s390] sm:$0xff] %v391
                %v393 = vld [vmem:[%s389 + $0x10] sm:$0xff]
                %394 = vst [vmem:[%s390 + $0x8] sm:$0xff] %v393
              $region103: #{no_relu_bottleneck.1} parent=97 // loop_footer
                %s388 = sadd.s32 1, %s384
              $region104: #{no_relu_bottleneck.1} parent=97 // loop_footer_branch
                %383 = sbr.rel target = $region100
              $region105: #{no_relu_bottleneck.1} parent=97 // loop_exit
                _
            $region98: #{no_relu_bottleneck.1} parent=89 // pred_fallthru
              _
          $region90: #{no_relu_bottleneck.1} parent=85 // pred_fallthru
            _
          %411 = vnop
        $region86: #{no_relu_bottleneck.1} parent=39 // pred_fallthru
          _
      $region40: #{no_relu_bottleneck.1} parent=5 // pred_fallthru
        _
      %p412 = scmp.le.s32.totalorder 1, %s15
      %p413 = scmp.lt.s32.totalorder %s15, 5
      %p414 = pnand %p412, %p413
      %p415 = pneg %p414
      // Predicated region
      $region121: #{no_relu_bottleneck.1} parent=5 // pred_check
        _
      $region122: #{no_relu_bottleneck.1} parent=5 // pred_check_branch
        %417 = sbr.rel (%p414) target = $region124
      $region123: #{no_relu_bottleneck.1} parent=5 // pred_region
        %s418 = ssub.s32 %s15, 1
        %s419 = sand.u32 %s42, 1
        %s420 = sand.u32 %s42, 1
        %s421 = smul.addr %s420, 32
        %s422 = scalar_lea.vmem [#allocation3], %s421
        // Predicated region
        $region125: #{no_relu_bottleneck.1} parent=123 // pred_check
          %p423 = pneg %p55
        $region126: #{no_relu_bottleneck.1} parent=123 // pred_check_branch
          %425 = sbr.rel (%p423) target = $region128
        $region127: #{no_relu_bottleneck.1} parent=123 // pred_region
          _
        $region128: #{no_relu_bottleneck.1} parent=123 // pred_fallthru
          _
        %s426 = sand.u32 %s96, 1
        %s427 = sand.u32 %s96, 1
        %s428 = smul.addr %s427, 16
        %s429 = scalar_lea.vmem [#allocation4], %s428
        // Predicated region
        $region129: #{no_relu_bottleneck.1} parent=123 // pred_check
          %p430 = pneg %p109
        $region130: #{no_relu_bottleneck.1} parent=123 // pred_check_branch
          %432 = sbr.rel (%p430) target = $region132
        $region131: #{no_relu_bottleneck.1} parent=123 // pred_region
          _
        $region132: #{no_relu_bottleneck.1} parent=123 // pred_fallthru
          _
        %s433 = sand.u32 %s42, 1
        %s434 = sand.u32 %s42, 1
        %s435 = smul.addr %s434, 32
        %s436 = scalar_lea.vmem [#allocation3], %s435
        %p437 = pneg %p55
        %p438 = pneg %p52
        %p439 = scmp.lt.s32.totalorder %s24, 1
        %s440 = scalar_select %p439, %s24, 1
        %p441 = scmp.lt.s32.totalorder %s25, 1
        %s442 = scalar_select %p441, %s25, 1
        %s443 = smul.addr %s442, 4
        %s444 = smul.addr %s440, 8
        %s445 = sadd.s32 %s443, %s444
        %s446 = smul.addr %s445, 8
        %s447 = scalar_lea.vmem %s1, %s446
        %p448 = pneg %p83
        %p449 = pneg %p80
        %s450 = sand.u32 %s96, 1
        %s451 = sand.u32 %s96, 1
        %s452 = smul.addr %s451, 16
        %s453 = scalar_lea.vmem [#allocation4], %s452
        %p454 = pneg %p109
        %p455 = pneg %p106
        %p456 = pneg %p130
        %p457 = pneg %p127
        %p458 = pneg %p151
        %p459 = pneg %p148
        %p460 = pneg %p172
        %p461 = pneg %p169
        %p462 = pneg %p193
        %p463 = pneg %p190
        %p464 = pneg %p214
        %p465 = pneg %p211
        %p466 = pneg %p235
        %p467 = pneg %p232
        %p468 = pneg %p263
        %p469 = pneg %p260
        %s470 = sand.u32 %s250, 1
        %s471 = sand.u32 %s250, 1
        %s472 = smul.addr %s471, 32
        %s473 = scalar_lea.vmem [#allocation5], %s472
        %p474 = scmp.lt.s32.totalorder %s24, 1
        %s475 = scalar_select %p474, %s24, 1
        %p476 = scmp.lt.s32.totalorder %s25, 1
        %s477 = scalar_select %p476, %s25, 1
        %s478 = smul.addr %s477, 4
        %s479 = smul.addr %s475, 8
        %s480 = sadd.s32 %s478, %s479
        %s481 = smul.addr %s480, 8
        %s482 = scalar_lea.vmem %s1, %s481
        %v484 = vld [vmem:[%s422] sm:$0xff]
        %v485 = vld [vmem:[%s422 + $0x8] sm:$0xff]
        %v486 = vld [vmem:[%s422 + $0x10] sm:$0xff]
        %v487 = vld [vmem:[%s422 + $0x18] sm:$0xff]
        %v488 = vld [vmem:[%s482] sm:$0xff]
        %v489 = vld [vmem:[%s482 + $0x8] sm:$0xff]
        %v490 = vld [vmem:[%s482 + $0x10] sm:$0xff]
        %v491 = vld [vmem:[%s482 + $0x18] sm:$0xff]
        %496 = vrot.lane.b32.xlu0 %v488, 1
        %v497 = vpop.permute.xlu0 %496
        %498 = vrot.lane.b32.xlu0 %v489, 1
        %v499 = vpop.permute.xlu0 %498
        %500 = vrot.lane.b32.xlu0 %v490, 1
        %v501 = vpop.permute.xlu0 %500
        %502 = vrot.lane.b32.xlu0 %v491, 1
        %v503 = vpop.permute.xlu0 %502
        %512 = vrot.lane.b32.xlu0 %v484, 17
        %v513 = vpop.permute.xlu0 %512
        %514 = vrot.lane.b32.xlu0 %v485, 17
        %v515 = vpop.permute.xlu0 %514
        %516 = vrot.lane.b32.xlu0 %v486, 17
        %v517 = vpop.permute.xlu0 %516
        %518 = vrot.lane.b32.xlu0 %v487, 17
        %v519 = vpop.permute.xlu0 %518
        %vm524 = vcmask 7168
        %v525 = vsel %vm524, 0.0, %v497
        %v526 = vsel %vm524, 0.0, %v499
        %v527 = vsel %vm524, 0.0, %v501
        %v528 = vsel %vm524, 0.0, %v503
        %vm529 = vcmask 138240
        %v530 = vsel %vm529, %v525, %v513
        %v531 = vsel %vm529, %v526, %v515
        %v532 = vsel %vm529, %v527, %v517
        %v533 = vsel %vm529, %v528, %v519
        %v534 = vsel %vm529, %v513, %v497
        %v535 = vsel %vm529, %v515, %v499
        %v536 = vsel %vm529, %v517, %v501
        %v537 = vsel %vm529, %v519, %v503
        %vm538 = vcmask 269312
        %v539 = vsel %vm538, %v534, 0.0
        %v540 = vsel %vm538, %v535, 0.0
        %v541 = vsel %vm538, %v536, 0.0
        %v542 = vsel %vm538, %v537, 0.0
        %v543 = vld [vmem:[%s3] sm:$0xf]
        %v544 = vpack.c.bf16 %v531, %v530
        %v545 = vpack.c.bf16 %v540, %v539
        %v546 = vpack.c.bf16 %v533, %v532
        %v547 = vpack.c.bf16 %v542, %v541
        %v548 = vld [vmem:[%s4] sm:$0xff]
        %550 = vset.pattern.permute.xlu0 0
        %551 = vperm.xlu0 %550, %v548
        %v552 = vpop.permute.xlu0 %551
        %vm554 = vcmask 261120
        %v556 = vsel %vm554, %v543, 0
        %558 = vmatprep.subr.bf16.mxu0 %v545
        %559 = vmatpush1.bf16.msra.mxu0 %v544
        %560 = vmatprep.subr.bf16.mxu0 %v547
        %561 = vmatpush1.bf16.msra.mxu0 %v546
        %562 = vmatprep.subr.bf16.mxu0 0
        %563 = vmatpush1.bf16.msra.mxu0 0
        %564 = vmatprep.subr.bf16.mxu0 0
        %565 = vmatpush1.bf16.msra.mxu0 0
        %566 = vmatprep.subr.bf16.mxu0 0
        %567 = vmatpush1.bf16.msra.mxu0 0
        %568 = vmatprep.subr.bf16.mxu0 0
        %569 = vmatpush1.bf16.msra.mxu0 0
        %570 = vmatprep.subr.bf16.mxu0 0
        %571 = vmatpush1.bf16.msra.mxu0 0
        %572 = vmatprep.subr.bf16.mxu0 0
        %573 = vmatpush1.bf16.msra.mxu0 0
        %574 = vmatprep.subr.bf16.mxu0 0
        %575 = vmatpush1.bf16.msra.mxu0 0
        %576 = vmatprep.subr.bf16.mxu0 0
        %577 = vmatpush1.bf16.msra.mxu0 0
        %578 = vmatprep.subr.bf16.mxu0 0
        %579 = vmatpush1.bf16.msra.mxu0 0
        %580 = vmatprep.subr.bf16.mxu0 0
        %581 = vmatpush1.bf16.msra.mxu0 0
        %582 = vmatprep.subr.bf16.mxu0 0
        %583 = vmatpush1.bf16.msra.mxu0 0
        %584 = vmatprep.subr.bf16.mxu0 0
        %585 = vmatpush1.bf16.msra.mxu0 0
        %586 = vmatprep.subr.bf16.mxu0 0
        %587 = vmatpush1.bf16.msra.mxu0 0
        %588 = vmatprep.subr.bf16.mxu0 0
        %589 = vmatpush1.bf16.msra.mxu0 0
        %590 = vmatprep.mubr.bf16.mxu0 0
        %591 = vmatmul.mubr.bf16.gmra.mrb[0].mxu0 %v556
        %v592 = vpop.f32.mrb[0].mxu0
        %v593 = vadd.f32 %v552, %v592
        %v594 = vpop.f32.mrb[0].mxu0
        %v595 = vadd.f32 %v552, %v594
        %v596 = vpop.f32.mrb[0].mxu0
        %v597 = vpop.f32.mrb[0].mxu0
        %598 = vdwg.mxu0
        %v599 = vmax.f32 %v593, 0.0
        %v600 = vmax.f32 %v595, 0.0
        %v601 = vld [vmem:[%s429] sm:$0x1]
        %v602 = vlaneseq
        %v603 = vshrl.u32 %v602, 7
        %v604 = vsub.s32 0, %v603
        %v605 = vrot.slane %v601, %v604
        %v606 = vmul.f32 %v599, %v605
        %607 = vst [vmem:[#allocation2] sm:$0xff] %v606
        %v608 = vld [vmem:[%s429 + $0x1] sm:$0x1]
        %v609 = vlaneseq
        %v610 = vshrl.u32 %v609, 7
        %v611 = vsub.s32 0, %v610
        %v612 = vrot.slane %v608, %v611
        %614 = vrot.lane.b32.xlu0 %v612, 1
        %v615 = vpop.permute.xlu0 %614
        %v617 = vmul.f32 %v599, %v615
        %v618 = vmul.f32 %v600, %v615
        %621 = vrot.lane.b32.xlu0 %v617, 127
        %v622 = vpop.permute.xlu0 %621
        %623 = vrot.lane.b32.xlu0 %v618, 127
        %v624 = vpop.permute.xlu0 %623
        %vm625 = vcmask 1039360
        %v626 = vsel %vm625, %v622, %v624
        %628 = vst [vmem:[#allocation2 + $0x8] sm:$0xff] %v626
        %v629 = vld [vmem:[%s429 + $0x2] sm:$0x1]
        %v630 = vlaneseq
        %v631 = vshrl.u32 %v630, 7
        %v632 = vsub.s32 0, %v631
        %v633 = vrot.slane %v629, %v632
        %635 = vrot.lane.b32.xlu0 %v633, 2
        %v636 = vpop.permute.xlu0 %635
        %v638 = vmul.f32 %v599, %v636
        %v639 = vmul.f32 %v600, %v636
        %642 = vrot.lane.b32.xlu0 %v638, 126
        %v643 = vpop.permute.xlu0 %642
        %644 = vrot.lane.b32.xlu0 %v639, 126
        %v645 = vpop.permute.xlu0 %644
        %vm646 = vcmask 1031168
        %v647 = vsel %vm646, %v643, %v645
        %649 = vst [vmem:[#allocation2 + $0x10] sm:$0xff] %v647
        %v650 = vld [vmem:[%s429 + $0x3] sm:$0x1]
        %v651 = vlaneseq
        %v652 = vshrl.u32 %v651, 7
        %v653 = vsub.s32 0, %v652
        %v654 = vrot.slane %v650, %v653
        %656 = vrot.lane.b32.xlu0 %v654, 16
        %v657 = vpop.permute.xlu0 %656
        %v659 = vmul.f32 %v599, %v657
        %v660 = vmul.f32 %v600, %v657
        %663 = vrot.lane.b32.xlu0 %v659, 112
        %v664 = vpop.permute.xlu0 %663
        %665 = vrot.lane.b32.xlu0 %v660, 112
        %v666 = vpop.permute.xlu0 %665
        %vm667 = vcmask 916480
        %v668 = vsel %vm667, %v664, %v666
        %670 = vst [vmem:[#allocation2 + $0x18] sm:$0xff] %v668
        %673 = vrot.lane.b32.xlu0 %v599, 111
        %v674 = vpop.permute.xlu0 %673
        %675 = vrot.lane.b32.xlu0 %v600, 111
        %v676 = vpop.permute.xlu0 %675
        %vm677 = vcmask 908288
        %v678 = vsel %vm677, %v674, %v676
        %680 = vst [vmem:[#allocation2 + $0x20] sm:$0xff] %v678
        %v681 = vld [vmem:[%s429 + $0x5] sm:$0x1]
        %v682 = vlaneseq
        %v683 = vshrl.u32 %v682, 7
        %v684 = vsub.s32 0, %v683
        %v685 = vrot.slane %v681, %v684
        %687 = vrot.lane.b32.xlu0 %v685, 18
        %v688 = vpop.permute.xlu0 %687
        %v690 = vmul.f32 %v599, %v688
        %v691 = vmul.f32 %v600, %v688
        %694 = vrot.lane.b32.xlu0 %v690, 110
        %v695 = vpop.permute.xlu0 %694
        %696 = vrot.lane.b32.xlu0 %v691, 110
        %v697 = vpop.permute.xlu0 %696
        %vm698 = vcmask 900096
        %v699 = vsel %vm698, %v695, %v697
        %701 = vst [vmem:[#allocation2 + $0x28] sm:$0xff] %v699
        %v702 = vld [vmem:[%s429 + $0x6] sm:$0x1]
        %v703 = vlaneseq
        %v704 = vshrl.u32 %v703, 7
        %v705 = vsub.s32 0, %v704
        %v706 = vrot.slane %v702, %v705
        %708 = vrot.lane.b32.xlu0 %v706, 32
        %v709 = vpop.permute.xlu0 %708
        %v711 = vmul.f32 %v599, %v709
        %v712 = vmul.f32 %v600, %v709
        %715 = vrot.lane.b32.xlu0 %v711, 96
        %v716 = vpop.permute.xlu0 %715
        %717 = vrot.lane.b32.xlu0 %v712, 96
        %v718 = vpop.permute.xlu0 %717
        %vm719 = vcmask 785408
        %v720 = vsel %vm719, %v716, %v718
        %722 = vst [vmem:[#allocation2 + $0x30] sm:$0xff] %v720
        %v723 = vld [vmem:[%s429 + $0x7] sm:$0x1]
        %v724 = vlaneseq
        %v725 = vshrl.u32 %v724, 7
        %v726 = vsub.s32 0, %v725
        %v727 = vrot.slane %v723, %v726
        %729 = vrot.lane.b32.xlu0 %v727, 33
        %v730 = vpop.permute.xlu0 %729
        %v732 = vmul.f32 %v599, %v730
        %v733 = vmul.f32 %v600, %v730
        %736 = vrot.lane.b32.xlu0 %v732, 95
        %v737 = vpop.permute.xlu0 %736
        %738 = vrot.lane.b32.xlu0 %v733, 95
        %v739 = vpop.permute.xlu0 %738
        %vm740 = vcmask 777216
        %v741 = vsel %vm740, %v737, %v739
        %743 = vst [vmem:[#allocation2 + $0x38] sm:$0xff] %v741
        %v744 = vld [vmem:[%s429 + $0x8] sm:$0x1]
        %v745 = vlaneseq
        %v746 = vshrl.u32 %v745, 7
        %v747 = vsub.s32 0, %v746
        %v748 = vrot.slane %v744, %v747
        %750 = vrot.lane.b32.xlu0 %v748, 34
        %v751 = vpop.permute.xlu0 %750
        %v753 = vmul.f32 %v599, %v751
        %v754 = vmul.f32 %v600, %v751
        %757 = vrot.lane.b32.xlu0 %v753, 94
        %v758 = vpop.permute.xlu0 %757
        %759 = vrot.lane.b32.xlu0 %v754, 94
        %v760 = vpop.permute.xlu0 %759
        %vm761 = vcmask 769024
        %v762 = vsel %vm761, %v758, %v760
        %764 = vst [vmem:[#allocation2 + $0x40] sm:$0xff] %v762
        %v765 = vld [vmem:[%s5] sm:$0xf]
        %v766 = vld [vmem:[#allocation2] sm:$0xff]
        %v767 = vld [vmem:[#allocation2 + $0x8] sm:$0xff]
        %v768 = vld [vmem:[#allocation2 + $0x10] sm:$0xff]
        %v769 = vld [vmem:[#allocation2 + $0x18] sm:$0xff]
        %v770 = vld [vmem:[#allocation2 + $0x20] sm:$0xff]
        %v771 = vld [vmem:[#allocation2 + $0x28] sm:$0xff]
        %v772 = vld [vmem:[#allocation2 + $0x30] sm:$0xff]
        %v773 = vld [vmem:[#allocation2 + $0x38] sm:$0xff]
        %v774 = vld [vmem:[#allocation2 + $0x40] sm:$0xff]
        %v775 = vpack.c.bf16 %v767, %v766
        %v776 = vpack.c.bf16 %v769, %v768
        %v777 = vpack.c.bf16 %v771, %v770
        %v778 = vpack.c.bf16 %v773, %v772
        %v779 = vpack.c.bf16 %v774, %v774
        %v780 = vld [vmem:[%s6] sm:$0xff]
        %782 = vset.pattern.permute.xlu0 0
        %783 = vperm.xlu0 %782, %v780
        %v784 = vpop.permute.xlu0 %783
        %vm786 = vcmask 588800
        %v788 = vsel %vm786, %v765, 0
        %vm790 = vcmask 1043456
        %v792 = vsel %vm790, %v779, 0
        %794 = vmatprep.subr.bf16.mxu0 0
        %795 = vmatpush1.bf16.msra.mxu0 %v775
        %796 = vmatprep.subr.bf16.mxu0 0
        %797 = vmatpush1.bf16.msra.mxu0 %v776
        %798 = vmatprep.subr.bf16.mxu0 0
        %799 = vmatpush1.bf16.msra.mxu0 %v777
        %800 = vmatprep.subr.bf16.mxu0 0
        %801 = vmatpush1.bf16.msra.mxu0 %v778
        %802 = vmatprep.subr.bf16.mxu0 0
        %803 = vmatpush1.bf16.msra.mxu0 %v792
        %804 = vmatprep.subr.bf16.mxu0 0
        %805 = vmatpush1.bf16.msra.mxu0 0
        %806 = vmatprep.subr.bf16.mxu0 0
        %807 = vmatpush1.bf16.msra.mxu0 0
        %808 = vmatprep.subr.bf16.mxu0 0
        %809 = vmatpush1.bf16.msra.mxu0 0
        %810 = vmatprep.subr.bf16.mxu0 0
        %811 = vmatpush1.bf16.msra.mxu0 0
        %812 = vmatprep.subr.bf16.mxu0 0
        %813 = vmatpush1.bf16.msra.mxu0 0
        %814 = vmatprep.subr.bf16.mxu0 0
        %815 = vmatpush1.bf16.msra.mxu0 0
        %816 = vmatprep.subr.bf16.mxu0 0
        %817 = vmatpush1.bf16.msra.mxu0 0
        %818 = vmatprep.subr.bf16.mxu0 0
        %819 = vmatpush1.bf16.msra.mxu0 0
        %820 = vmatprep.subr.bf16.mxu0 0
        %821 = vmatpush1.bf16.msra.mxu0 0
        %822 = vmatprep.subr.bf16.mxu0 0
        %823 = vmatpush1.bf16.msra.mxu0 0
        %824 = vmatprep.subr.bf16.mxu0 0
        %825 = vmatpush1.bf16.msra.mxu0 0
        %826 = vmatprep.mubr.bf16.mxu0 0
        %827 = vmatmul.mubr.bf16.gmra.mrb[0].mxu0 %v788
        %v828 = vpop.f32.mrb[0].mxu0
        %v829 = vadd.f32 %v784, %v828
        %v830 = vpop.f32.mrb[0].mxu0
        %v831 = vpop.f32.mrb[0].mxu0
        %v832 = vpop.f32.mrb[0].mxu0
        %833 = vdwg.mxu0
        %v834 = vmax.f32 %v829, 0.0
        %v835 = vld [vmem:[%s7] sm:$0xf]
        %v836 = vld [vmem:[%s7 + $0x4] sm:$0xf]
        %v837 = vld [vmem:[%s7 + $0x8] sm:$0xf]
        %v838 = vld [vmem:[%s7 + $0xc] sm:$0xf]
        %v839 = vpack.c.bf16 %v834, %v834
        %v840 = vld [vmem:[%s8] sm:$0xff]
        %v841 = vld [vmem:[%s8 + $0x8] sm:$0xff]
        %v842 = vld [vmem:[%s8 + $0x10] sm:$0xff]
        %v843 = vld [vmem:[%s8 + $0x18] sm:$0xff]
        %845 = vset.pattern.permute.xlu0 0
        %846 = vperm.xlu0 %845, %v840
        %v847 = vpop.permute.xlu0 %846
        %850 = vset.pattern.permute.xlu0 0
        %851 = vperm.xlu0 %850, %v841
        %v852 = vpop.permute.xlu0 %851
        %855 = vset.pattern.permute.xlu0 0
        %856 = vperm.xlu0 %855, %v842
        %v857 = vpop.permute.xlu0 %856
        %860 = vset.pattern.permute.xlu0 0
        %861 = vperm.xlu0 %860, %v843
        %v862 = vpop.permute.xlu0 %861
        %v868 = vunpack.c.l.b16 %v835
        %v869 = vunpack.c.l.b16 %v836
        %v870 = vunpack.c.l.b16 %v837
        %v871 = vunpack.c.l.b16 %v838
        %v872 = vpack.c.b16 %v869, %v868
        %v873 = vpack.c.b16 %v871, %v870
        %vm874 = vcmask 64512
        %v876 = vsel %vm874, %v872, 0
        %v879 = vsel %vm874, %v873, 0
        %v882 = vsel %vm790, %v839, 0
        %884 = vmatprep.subr.bf16.mxu0 0
        %885 = vmatpush1.bf16.msra.mxu0 %v882
        %886 = vmatprep.subr.bf16.mxu0 0
        %887 = vmatpush1.bf16.msra.mxu0 0
        %888 = vmatprep.subr.bf16.mxu0 0
        %889 = vmatpush1.bf16.msra.mxu0 0
        %890 = vmatprep.subr.bf16.mxu0 0
        %891 = vmatpush1.bf16.msra.mxu0 0
        %892 = vmatprep.subr.bf16.mxu0 0
        %893 = vmatpush1.bf16.msra.mxu0 0
        %894 = vmatprep.subr.bf16.mxu0 0
        %895 = vmatpush1.bf16.msra.mxu0 0
        %896 = vmatprep.subr.bf16.mxu0 0
        %897 = vmatpush1.bf16.msra.mxu0 0
        %898 = vmatprep.subr.bf16.mxu0 0
        %899 = vmatpush1.bf16.msra.mxu0 0
        %900 = vmatprep.subr.bf16.mxu0 0
        %901 = vmatpush1.bf16.msra.mxu0 0
        %902 = vmatprep.subr.bf16.mxu0 0
        %903 = vmatpush1.bf16.msra.mxu0 0
        %904 = vmatprep.subr.bf16.mxu0 0
        %905 = vmatpush1.bf16.msra.mxu0 0
        %906 = vmatprep.subr.bf16.mxu0 0
        %907 = vmatpush1.bf16.msra.mxu0 0
        %908 = vmatprep.subr.bf16.mxu0 0
        %909 = vmatpush1.bf16.msra.mxu0 0
        %910 = vmatprep.subr.bf16.mxu0 0
        %911 = vmatpush1.bf16.msra.mxu0 0
        %912 = vmatprep.subr.bf16.mxu0 0
        %913 = vmatpush1.bf16.msra.mxu0 0
        %914 = vmatprep.subr.bf16.mxu0 0
        %915 = vmatpush1.bf16.msra.mxu0 0
        %916 = vmatprep.mubr.bf16.mxu0 0
        %917 = vmatmul.mubr.bf16.gmra.mrb[0].mxu0 %v876
        %v918 = vpop.f32.mrb[0].mxu0
        %v919 = vadd.f32 %v847, %v918
        %v920 = vpop.f32.mrb[0].mxu0
        %v921 = vpop.f32.mrb[0].mxu0
        %v922 = vadd.f32 %v852, %v921
        %v923 = vpop.f32.mrb[0].mxu0
        %924 = vmatprep.mubr.bf16.mxu0 0
        %925 = vmatmul.mubr.bf16.gmra.mrb[0].mxu0 %v879
        %v926 = vpop.f32.mrb[0].mxu0
        %v927 = vadd.f32 %v857, %v926
        %v928 = vpop.f32.mrb[0].mxu0
        %v929 = vpop.f32.mrb[0].mxu0
        %v930 = vadd.f32 %v862, %v929
        %v931 = vpop.f32.mrb[0].mxu0
        %932 = vdwg.mxu0
        %v933 = vadd.f32 %v919, %v484
        %v934 = vadd.f32 %v922, %v485
        %v935 = vadd.f32 %v927, %v486
        %v936 = vadd.f32 %v930, %v487
        %937 = vst [vmem:[%s473] sm:$0xff] %v933
        %938 = vst [vmem:[%s473 + $0x8] sm:$0xff] %v934
        %939 = vst [vmem:[%s473 + $0x10] sm:$0xff] %v935
        %940 = vst [vmem:[%s473 + $0x18] sm:$0xff] %v936
        %s941 = sand.u32 %s250, 1
        %s942 = sand.u32 %s250, 1
        %s943 = smul.addr %s942, 32
        %s944 = scalar_lea.vmem [#allocation5], %s943
        // Predicated region
        $region133: #{no_relu_bottleneck.1} parent=123 // pred_check
          %p945 = pneg %p260
        $region134: #{no_relu_bottleneck.1} parent=123 // pred_check_branch
          %947 = sbr.rel (%p945) target = $region136
        $region135: #{no_relu_bottleneck.1} parent=123 // pred_region
          %s948 = smul.addr %s24, 8
          %s949 = sadd.s32 %s25, %s948
          %s950 = smul.addr %s949, 8
          %s951 = scalar_lea.vmem %s9, %s950
          // Predicated region
          $region137: #{no_relu_bottleneck.1} parent=135 // pred_check
            _
          $region138: #{no_relu_bottleneck.1} parent=135 // pred_check_branch
            %953 = sbr.rel (0) target = $region140
          $region139: #{no_relu_bottleneck.1} parent=135 // pred_region
            // Predicated region
            $region141: #{no_relu_bottleneck.1} parent=139 // pred_check
              _
            $region142: #{no_relu_bottleneck.1} parent=139 // pred_check_branch
              %955 = sbr.rel (0) target = $region144
            $region143: #{no_relu_bottleneck.1} parent=139 // pred_region
              // Predicated region
              $region156: #{no_relu_bottleneck.1} parent=143 // pred_check
                _
              $region157: #{no_relu_bottleneck.1} parent=143 // pred_check_branch
                %976 = sbr.rel (0) target = $region159
              $region158: #{no_relu_bottleneck.1} parent=143 // pred_region
                loop: start=0, step=1, limit=1
                $region160: #{no_relu_bottleneck.1} parent=158 // loop_pre_header
                  _
                $region161: #{no_relu_bottleneck.1} parent=158 // loop_header
                  %s978 = sphi 0, %s982
                  %p979 = scmp.ge.s32.totalorder %s978, 1
                  %s983 = sphi %s944, %s944
                  %s984 = sphi %s951, %s951
                $region162: #{no_relu_bottleneck.1} parent=158 // loop_header_branch
                  %981 = sbr.rel (%p979) target = $region166
                $region163: #{no_relu_bottleneck.1} parent=158 // loop_body
                  %v985 = vld [vmem:[%s983] sm:$0xff]
                  %986 = vst [vmem:[%s984] sm:$0xff] %v985
                  %v987 = vld [vmem:[%s983 + $0x8] sm:$0xff]
                  %988 = vst [vmem:[%s984 + $0x10] sm:$0xff] %v987
                  %v989 = vld [vmem:[%s983 + $0x10] sm:$0xff]
                  %990 = vst [vmem:[%s984 + $0x20] sm:$0xff] %v989
                  %v991 = vld [vmem:[%s983 + $0x18] sm:$0xff]
                  %992 = vst [vmem:[%s984 + $0x30] sm:$0xff] %v991
                $region164: #{no_relu_bottleneck.1} parent=158 // loop_footer
                  %s982 = sadd.s32 1, %s978
                $region165: #{no_relu_bottleneck.1} parent=158 // loop_footer_branch
                  %977 = sbr.rel target = $region161
                $region166: #{no_relu_bottleneck.1} parent=158 // loop_exit
                  _
              $region159: #{no_relu_bottleneck.1} parent=143 // pred_fallthru
                _
              // Predicated region
              $region167: #{no_relu_bottleneck.1} parent=143 // pred_check
                _
              $region168: #{no_relu_bottleneck.1} parent=143 // pred_check_branch
                %994 = sbr.rel target = $region170
              $region169: #{no_relu_bottleneck.1} parent=143 // pred_region
                _
              $region170: #{no_relu_bottleneck.1} parent=143 // pred_fallthru
                _
            $region144: #{no_relu_bottleneck.1} parent=139 // pred_fallthru
              _
            // Predicated region
            $region145: #{no_relu_bottleneck.1} parent=139 // pred_check
              _
            $region146: #{no_relu_bottleneck.1} parent=139 // pred_check_branch
              %957 = sbr.rel target = $region148
            $region147: #{no_relu_bottleneck.1} parent=139 // pred_region
              loop: start=0, step=1, limit=1
              $region149: #{no_relu_bottleneck.1} parent=147 // loop_pre_header
                _
              $region150: #{no_relu_bottleneck.1} parent=147 // loop_header
                %s960 = sphi 0, %s964
                %p961 = scmp.ge.s32.totalorder %s960, 1
                %s965 = sphi %s944, %s944
                %s966 = sphi %s951, %s951
              $region151: #{no_relu_bottleneck.1} parent=147 // loop_header_branch
                %963 = sbr.rel (%p961) target = $region155
              $region152: #{no_relu_bottleneck.1} parent=147 // loop_body
                %v967 = vld [vmem:[%s965] sm:$0xff]
                %968 = vst [vmem:[%s966] sm:$0xff] %v967
                %v969 = vld [vmem:[%s965 + $0x8] sm:$0xff]
                %970 = vst [vmem:[%s966 + $0x10] sm:$0xff] %v969
                %v971 = vld [vmem:[%s965 + $0x10] sm:$0xff]
                %972 = vst [vmem:[%s966 + $0x20] sm:$0xff] %v971
                %v973 = vld [vmem:[%s965 + $0x18] sm:$0xff]
                %974 = vst [vmem:[%s966 + $0x30] sm:$0xff] %v973
              $region153: #{no_relu_bottleneck.1} parent=147 // loop_footer
                %s964 = sadd.s32 1, %s960
              $region154: #{no_relu_bottleneck.1} parent=147 // loop_footer_branch
                %959 = sbr.rel target = $region150
              $region155: #{no_relu_bottleneck.1} parent=147 // loop_exit
                _
            $region148: #{no_relu_bottleneck.1} parent=139 // pred_fallthru
              _
          $region140: #{no_relu_bottleneck.1} parent=135 // pred_fallthru
            _
          %995 = vnop
        $region136: #{no_relu_bottleneck.1} parent=123 // pred_fallthru
          _
      $region124: #{no_relu_bottleneck.1} parent=5 // pred_fallthru
        _
      %p996 = scmp.le.s32.totalorder 2, %s15
      // Predicated region
      $region171: #{no_relu_bottleneck.1} parent=5 // pred_check
        %p997 = pneg %p996
      $region172: #{no_relu_bottleneck.1} parent=5 // pred_check_branch
        %999 = sbr.rel (%p997) target = $region174
      $region173: #{no_relu_bottleneck.1} parent=5 // pred_region
        %s1000 = ssub.s32 %s15, 2
        // Predicated region
        $region175: #{no_relu_bottleneck.1} parent=173 // pred_check
          %p1001 = pneg %p266
        $region176: #{no_relu_bottleneck.1} parent=173 // pred_check_branch
          %1003 = sbr.rel (%p1001) target = $region178
        $region177: #{no_relu_bottleneck.1} parent=173 // pred_region
          %s1004 = sand.u32 %s251, 1
          %s1005 = sand.u32 %s251, 1
          %s1006 = smul.addr %s1005, 32
          %s1007 = scalar_lea.vmem [#allocation5], %s1006
        $region178: #{no_relu_bottleneck.1} parent=173 // pred_fallthru
          _
      $region174: #{no_relu_bottleneck.1} parent=5 // pred_fallthru
        _
    $region6: #{no_relu_bottleneck.1} parent=1 // loop_footer
      %s19 = sadd.s32 1, %s15
    $region7: #{no_relu_bottleneck.1} parent=1 // loop_footer_branch
      %14 = sbr.rel target = $region3
    $region8: #{no_relu_bottleneck.1} parent=1 // loop_exit
      _

</llo_original>
